<compile_context>
chip_gen: v6e
topology: v6e:2x2x1
jax: 0.10.0
libtpu: 0.0.40
codegen_flags: <defaults>
</compile_context>

<pallas_src>
import jax
import jax.numpy as jnp
from jax.experimental import pallas as pl
from jax.experimental.pallas import tpu as pltpu


def _explore_decoder_kernel(all_mem_ref, last_mem_ref, item_ref, mask_ref,
                            u_ref, w_ref, vrow_ref, vb_ref, e_ref,
                            out_ref):
    Bt, L, H = all_mem_ref.shape
    N = out_ref.shape[-1]

    am3 = all_mem_ref[...]                                    # (Bt, L, H) all_memory values
    lm = last_mem_ref[...]                                    # (Bt, H)    last_memory values

    # U_explore(all_memory) as a single (Bt*L, H) @ (H, H) matmul (dropout = identity).
    am_u = jnp.dot(am3.reshape(Bt * L, H), u_ref[...],
                   preferred_element_type=jnp.float32)        # (Bt*L, H)
    # W_explore(last_memory)
    lm_w = jnp.dot(lm, w_ref[...],
                   preferred_element_type=jnp.float32)        # (Bt, H)

    # tanh(U x_all + W x_last), broadcasting last_memory over the sequence axis.
    ee = jnp.tanh(am_u.reshape(Bt, L, H) + lm_w[:, None, :])  # (Bt, L, H)

    # V_explore projection: width-1 output -> VPU multiply + lane reduce (not MXU),
    # bias read as an SMEM scalar.
    scores = jnp.sum(ee * vrow_ref[...], axis=-1, keepdims=True)  # (Bt, L, 1)
    scores = scores + vb_ref[0, 0]
    scores = jnp.where(mask_ref[...] > 0, -1000000000.0, scores)

    # softmax over the sequence axis (per batch element), reciprocal on the EUP.
    m = jnp.max(scores, axis=1, keepdims=True)                # (Bt, 1, 1)
    p = jnp.exp(scores - m)                                   # (Bt, L, 1)
    alpha = p * pl.reciprocal(jnp.sum(p, axis=1, keepdims=True), approx=False)

    # attention-weighted sum of the (untransformed) memory values
    out_e = jnp.sum(alpha * am3, axis=1)                      # (Bt, H)

    # Explore(cat([output_e, last_memory])) as ONE (Bt, 2H) @ (2H, N) matmul.
    cat = jnp.concatenate([out_e, lm], axis=-1)               # (Bt, 2H)
    logits = jnp.dot(cat, e_ref[...],
                     preferred_element_type=jnp.float32)      # (Bt, N)

    # explore_mask: items already present in the sequence (and id > 0) are suppressed.
    # Presence test kept in integers (no bool->f32 cast / float sum / float compare).
    items = item_ref[...]                                     # (Bt, L, 1) int32
    iota_n = jax.lax.broadcasted_iota(jnp.int32, (Bt, L, N), 2)
    present = jnp.logical_and(items == iota_n, items > 0)     # (Bt, L, N) bool
    emask = jnp.max(present.astype(jnp.int32), axis=1) > 0    # (Bt, N)

    # masked_fill(-inf) followed by sigmoid  ==  exactly 0.0 where masked
    out_ref[...] = jnp.where(emask, 0.0, jax.nn.sigmoid(logits))


def explore_decoder(all_memory, last_memory, item_seq, params, mask=None,
                    block_b=8):
    B, L, H = all_memory.shape
    N = params["e_w"].shape[0]

    if mask is None:
        mask = jnp.zeros((B, L), dtype=jnp.int32)
    mask = mask.astype(jnp.int32)
    item_seq = item_seq.astype(jnp.int32)

    # Batch blocking: one block covers the whole batch when B is small.
    Bt = min(B, block_b)
    nb = pl.cdiv(B, Bt)
    Bp = nb * Bt
    if Bp != B:
        pad = Bp - B
        all_memory = jnp.pad(all_memory, ((0, pad), (0, 0), (0, 0)))
        last_memory = jnp.pad(last_memory, ((0, pad), (0, 0)))
        item_seq = jnp.pad(item_seq, ((0, pad), (0, 0)))
        mask = jnp.pad(mask, ((0, pad), (0, 0)))

    # Pre-transpose torch-style weights so the kernel computes  x @ W^T  as  x @ Wt.
    u_t = params["u_w"].T                   # (H, H)
    w_t = params["w_w"].T                   # (H, H)
    v_row = params["v_w"].reshape(1, H)     # (1, H)  used as a VPU multiply, not a matmul
    v_b = params["v_b"].reshape(1, 1)       # (1, 1)  SMEM scalar
    e_t = params["e_w"].T                   # (2H, N) single fused weight

    items3 = item_seq.reshape(Bp, L, 1)
    mask3 = mask.reshape(Bp, L, 1)

    flops = int(2 * Bp * L * H * H          # U_explore
                + 2 * Bp * H * H            # W_explore
                + 2 * Bp * L * H            # V_explore multiply-reduce
                + 2 * Bp * (2 * H) * N)     # Explore
    transcendentals = int(Bp * L * H + Bp * L + Bp * N)   # tanh, exp, sigmoid
    bytes_accessed = int(4 * (Bp * L * H + Bp * H + 2 * Bp * L
                              + 2 * H * H + H + 1 + 2 * H * N + Bp * N))

    out = pl.pallas_call(
        _explore_decoder_kernel,
        out_shape=jax.ShapeDtypeStruct((Bp, N), jnp.float32),
        grid=(nb,),
        in_specs=[
            pl.BlockSpec((Bt, L, H), lambda b: (b, 0, 0)),   # all_memory
            pl.BlockSpec((Bt, H), lambda b: (b, 0)),         # last_memory
            pl.BlockSpec((Bt, L, 1), lambda b: (b, 0, 0)),   # item_seq
            pl.BlockSpec((Bt, L, 1), lambda b: (b, 0, 0)),   # attention mask
            pl.BlockSpec((H, H), lambda b: (0, 0)),          # U_explore^T
            pl.BlockSpec((H, H), lambda b: (0, 0)),          # W_explore^T
            pl.BlockSpec((1, H), lambda b: (0, 0)),          # V_explore weight row
            pl.BlockSpec((1, 1), lambda b: (0, 0),           # V_explore bias (scalar)
                         memory_space=pltpu.MemorySpace.SMEM),
            pl.BlockSpec((2 * H, N), lambda b: (0, 0)),      # Explore^T (fused)
        ],
        out_specs=pl.BlockSpec((Bt, N), lambda b: (b, 0)),
        compiler_params=pltpu.CompilerParams(
            dimension_semantics=("parallel",)),
        cost_estimate=pl.CostEstimate(
            flops=flops, transcendentals=transcendentals,
            bytes_accessed=bytes_accessed),
    )(all_memory, last_memory, items3, mask3, u_t, w_t, v_row, v_b, e_t)
    return out[:B]


def explore_decoder_ref(all_memory, last_memory, item_seq, params, mask=None):
    """Pure-JAX reference mirroring the PyTorch forward (dropout = identity)."""
    N = params["e_w"].shape[0]
    am = all_memory @ params["u_w"].T                           # (B, L, H)
    lm = last_memory @ params["w_w"].T                          # (B, H)
    ee = jnp.tanh(am + lm[:, None, :])                          # (B, L, H)
    sc = (ee @ params["v_w"].T)[..., 0] + params["v_b"][0]      # (B, L)
    if mask is not None:
        sc = jnp.where(mask, -1000000000.0, sc)
    alpha = jax.nn.softmax(sc, axis=1)                          # (B, L)
    out_e = jnp.sum(alpha[:, :, None] * all_memory, axis=1)     # (B, H)
    cat = jnp.concatenate([out_e, last_memory], axis=1)         # (B, 2H)
    logits = cat @ params["e_w"].T                              # (B, N)
    onehot = jax.nn.one_hot(item_seq, N, dtype=jnp.float32)     # (B, L, N)
    emask = jnp.einsum('bl,bln->bn',
                       (item_seq > 0).astype(jnp.float32), onehot) > 0
    logits = jnp.where(emask, -jnp.inf, logits)
    return jax.nn.sigmoid(logits)


if __name__ == "__main__":
    B, L, H, N = 2, 8, 32, 256   # batch, seq_len, hidden_size, num_item

    key = jax.random.PRNGKey(0)
    k = jax.random.split(key, 8)
    all_memory = jax.random.normal(k[0], (B, L, H), jnp.float32)
    last_memory = jax.random.normal(k[1], (B, H), jnp.float32)
    item_seq = jax.random.randint(k[2], (B, L), 0, N, dtype=jnp.int32)
    attn_mask = jnp.zeros((B, L), dtype=bool).at[:, -1].set(True)

    # Deterministic synthetic parameters (torch nn.Linear weight shapes).
    params = {
        "u_w": 0.1 * jax.random.normal(k[3], (H, H), jnp.float32),      # U_explore.weight
        "w_w": 0.1 * jax.random.normal(k[4], (H, H), jnp.float32),      # W_explore.weight
        "v_w": 0.1 * jax.random.normal(k[5], (1, H), jnp.float32),      # V_explore.weight
        "v_b": 0.1 * jax.random.normal(k[6], (1,), jnp.float32),        # V_explore.bias
        "e_w": 0.1 * jax.random.normal(k[7], (N, 2 * H), jnp.float32),  # Explore.weight
    }

    out = explore_decoder(all_memory, last_memory, item_seq, params, mask=attn_mask)
    out = jax.block_until_ready(out)

    ref = explore_decoder_ref(all_memory, last_memory, item_seq, params, mask=attn_mask)
    assert out.shape == (B, N)
    assert bool(jnp.all(jnp.isfinite(out)))
    assert jnp.allclose(out, ref, atol=1e-5, rtol=1e-5), \
        float(jnp.max(jnp.abs(out - ref)))
    print("KERNEL_OK")
</pallas_src>

<mosaic_0001>
module attributes {stable_mosaic.version = 11 : i64} {
  func.func @_explore_decoder_kernel(%arg0: i32, %arg1: memref<2x8x32xf32, #tpu.memory_space<vmem>>, %arg2: memref<2x32xf32, #tpu.memory_space<vmem>>, %arg3: memref<2x8x1xi32, #tpu.memory_space<vmem>>, %arg4: memref<2x8x1xi32, #tpu.memory_space<vmem>>, %arg5: memref<32x32xf32, #tpu.memory_space<vmem>>, %arg6: memref<32x32xf32, #tpu.memory_space<vmem>>, %arg7: memref<1x32xf32, #tpu.memory_space<vmem>>, %arg8: memref<1x1xf32, #tpu.memory_space<smem>>, %arg9: memref<64x256xf32, #tpu.memory_space<vmem>>, %arg10: memref<2x256xf32, #tpu.memory_space<vmem>>) attributes {dimension_semantics = [#tpu.dimension_semantics<parallel>], iteration_bounds = array<i64: 1>, scalar_prefetch = 0 : i64, scratch_operands = 0 : i64, tpu.core_type = #tpu.core_type<tc>, window_params = [{transform_indices = @transform_0, window_bounds = array<i64: 2, 8, 32>}, {transform_indices = @transform_1, window_bounds = array<i64: 2, 32>}, {transform_indices = @transform_2, window_bounds = array<i64: 2, 8, 1>}, {transform_indices = @transform_3, window_bounds = array<i64: 2, 8, 1>}, {pipeline_mode = #tpu.pipeline_mode<synchronous>, transform_indices = @transform_4, window_bounds = array<i64: 32, 32>}, {pipeline_mode = #tpu.pipeline_mode<synchronous>, transform_indices = @transform_5, window_bounds = array<i64: 32, 32>}, {pipeline_mode = #tpu.pipeline_mode<synchronous>, transform_indices = @transform_6, window_bounds = array<i64: 1, 32>}, {transform_indices = @transform_7, window_bounds = array<i64: 1, 1>}, {pipeline_mode = #tpu.pipeline_mode<synchronous>, transform_indices = @transform_8, window_bounds = array<i64: 64, 256>}, {transform_indices = @transform_9, window_bounds = array<i64: 2, 256>}]} {
    %c0 = arith.constant 0 : index
    %c0_0 = arith.constant 0 : index
    %c0_1 = arith.constant 0 : index
    %0 = vector.load %arg1[%c0, %c0_0, %c0_1] : memref<2x8x32xf32, #tpu.memory_space<vmem>>, vector<2x8x32xf32>
    %c0_2 = arith.constant 0 : index
    %c0_3 = arith.constant 0 : index
    %1 = vector.load %arg2[%c0_2, %c0_3] : memref<2x32xf32, #tpu.memory_space<vmem>>, vector<2x32xf32>
    %2 = vector.shape_cast %0 : vector<2x8x32xf32> to vector<16x32xf32>
    %c0_4 = arith.constant 0 : index
    %c0_5 = arith.constant 0 : index
    %3 = vector.load %arg5[%c0_4, %c0_5] : memref<32x32xf32, #tpu.memory_space<vmem>>, vector<32x32xf32>
    %cst = arith.constant dense<0.000000e+00> : vector<16x32xf32>
    %4 = tpu.matmul %2, %3, %cst {dimension_numbers = #tpu.dot_dimension_numbers<[1], [0], [0], [1], [0, 0, 1, 1], [], []>} : vector<16x32xf32>, vector<32x32xf32>, vector<16x32xf32> -> vector<16x32xf32>
    %c0_6 = arith.constant 0 : index
    %c0_7 = arith.constant 0 : index
    %5 = vector.load %arg6[%c0_6, %c0_7] : memref<32x32xf32, #tpu.memory_space<vmem>>, vector<32x32xf32>
    %cst_8 = arith.constant dense<0.000000e+00> : vector<2x32xf32>
    %6 = tpu.matmul %1, %5, %cst_8 {dimension_numbers = #tpu.dot_dimension_numbers<[1], [0], [0], [1], [0, 0, 1, 1], [], []>} : vector<2x32xf32>, vector<32x32xf32>, vector<2x32xf32> -> vector<2x32xf32>
    %7 = vector.shape_cast %4 : vector<16x32xf32> to vector<2x8x32xf32>
    %8 = vector.shape_cast %6 : vector<2x32xf32> to vector<2x1x32xf32>
    %9 = vector.broadcast %8 : vector<2x1x32xf32> to vector<2x8x32xf32>
    %10 = arith.addf %7, %9 : vector<2x8x32xf32>
    %11 = math.tanh %10 : vector<2x8x32xf32>
    %c0_9 = arith.constant 0 : index
    %c0_10 = arith.constant 0 : index
    %12 = vector.load %arg7[%c0_9, %c0_10] : memref<1x32xf32, #tpu.memory_space<vmem>>, vector<1x32xf32>
    %13 = vector.shape_cast %12 : vector<1x32xf32> to vector<1x1x32xf32>
    %14 = vector.broadcast %13 : vector<1x1x32xf32> to vector<2x8x32xf32>
    %15 = arith.mulf %11, %14 : vector<2x8x32xf32>
    %cst_11 = arith.constant dense<0.000000e+00> : vector<2x8xf32>
    %16 = vector.multi_reduction <add>, %15, %cst_11 [2] : vector<2x8x32xf32> to vector<2x8xf32>
    %17 = vector.shape_cast %16 : vector<2x8xf32> to vector<2x8x1xf32>
    %c0_12 = arith.constant 0 : index
    %c0_13 = arith.constant 0 : index
    %18 = memref.load %arg8[%c0_12, %c0_13] : memref<1x1xf32, #tpu.memory_space<smem>>
    %19 = vector.broadcast %18 : f32 to vector<2x8x1xf32>
    %20 = arith.addf %17, %19 : vector<2x8x1xf32>
    %c0_14 = arith.constant 0 : index
    %c0_15 = arith.constant 0 : index
    %c0_16 = arith.constant 0 : index
    %21 = vector.load %arg4[%c0_14, %c0_15, %c0_16] : memref<2x8x1xi32, #tpu.memory_space<vmem>>, vector<2x8x1xi32>
    %c0_i32 = arith.constant 0 : i32
    %22 = vector.broadcast %c0_i32 : i32 to vector<2x8x1xi32>
    %23 = arith.cmpi sgt, %21, %22 : vector<2x8x1xi32>
    %cst_17 = arith.constant -1.000000e+09 : f32
    %24 = vector.broadcast %cst_17 : f32 to vector<2x8x1xf32>
    %25 = arith.select %23, %24, %20 : vector<2x8x1xi1>, vector<2x8x1xf32>
    %cst_18 = arith.constant dense<0xFF800000> : vector<2x1xf32>
    %26 = vector.multi_reduction <maximumf>, %25, %cst_18 [1] : vector<2x8x1xf32> to vector<2x1xf32>
    %27 = vector.shape_cast %26 : vector<2x1xf32> to vector<2x1x1xf32>
    %28 = vector.broadcast %27 : vector<2x1x1xf32> to vector<2x8x1xf32>
    %29 = arith.subf %25, %28 : vector<2x8x1xf32>
    %30 = math.exp %29 : vector<2x8x1xf32>
    %cst_19 = arith.constant dense<0.000000e+00> : vector<2x1xf32>
    %31 = vector.multi_reduction <add>, %30, %cst_19 [1] : vector<2x8x1xf32> to vector<2x1xf32>
    %32 = vector.shape_cast %31 : vector<2x1xf32> to vector<2x1x1xf32>
    %33 = tpu.reciprocal %32 : vector<2x1x1xf32> -> vector<2x1x1xf32>
    %34 = vector.broadcast %33 : vector<2x1x1xf32> to vector<2x8x1xf32>
    %35 = arith.mulf %30, %34 : vector<2x8x1xf32>
    %36 = vector.broadcast %35 : vector<2x8x1xf32> to vector<2x8x32xf32>
    %37 = arith.mulf %36, %0 : vector<2x8x32xf32>
    %cst_20 = arith.constant dense<0.000000e+00> : vector<2x32xf32>
    %38 = vector.multi_reduction <add>, %37, %cst_20 [1] : vector<2x8x32xf32> to vector<2x32xf32>
    %39 = tpu.concatenate %38, %1 in 1 : vector<2x32xf32>, vector<2x32xf32> -> vector<2x64xf32>
    %c0_21 = arith.constant 0 : index
    %c0_22 = arith.constant 0 : index
    %40 = vector.load %arg9[%c0_21, %c0_22] : memref<64x256xf32, #tpu.memory_space<vmem>>, vector<64x256xf32>
    %cst_23 = arith.constant dense<0.000000e+00> : vector<2x256xf32>
    %41 = tpu.matmul %39, %40, %cst_23 {dimension_numbers = #tpu.dot_dimension_numbers<[1], [0], [0], [1], [0, 0, 1, 1], [], []>} : vector<2x64xf32>, vector<64x256xf32>, vector<2x256xf32> -> vector<2x256xf32>
    %c0_24 = arith.constant 0 : index
    %c0_25 = arith.constant 0 : index
    %c0_26 = arith.constant 0 : index
    %42 = vector.load %arg3[%c0_24, %c0_25, %c0_26] : memref<2x8x1xi32, #tpu.memory_space<vmem>>, vector<2x8x1xi32>
    %43 = tpu.iota {dimensions = array<i32: 2>} : vector<2x8x256xi32>
    %44 = vector.broadcast %42 : vector<2x8x1xi32> to vector<2x8x256xi32>
    %45 = arith.cmpi eq, %44, %43 : vector<2x8x256xi32>
    %c0_i32_27 = arith.constant 0 : i32
    %46 = vector.broadcast %c0_i32_27 : i32 to vector<2x8x1xi32>
    %47 = arith.cmpi sgt, %42, %46 : vector<2x8x1xi32>
    %48 = vector.broadcast %47 : vector<2x8x1xi1> to vector<2x8x256xi1>
    %49 = arith.andi %45, %48 : vector<2x8x256xi1>
    %50 = arith.extui %49 : vector<2x8x256xi1> to vector<2x8x256xi32>
    %cst_28 = arith.constant dense<-2147483648> : vector<2x256xi32>
    %51 = vector.multi_reduction <maxsi>, %50, %cst_28 [1] : vector<2x8x256xi32> to vector<2x256xi32>
    %c0_i32_29 = arith.constant 0 : i32
    %52 = vector.broadcast %c0_i32_29 : i32 to vector<2x256xi32>
    %53 = arith.cmpi sgt, %51, %52 : vector<2x256xi32>
    %54 = arith.negf %41 : vector<2x256xf32>
    %55 = math.exp %54 : vector<2x256xf32>
    %cst_30 = arith.constant 1.000000e+00 : f32
    %56 = vector.broadcast %cst_30 : f32 to vector<2x256xf32>
    %57 = arith.addf %56, %55 : vector<2x256xf32>
    %58 = arith.divf %56, %57 : vector<2x256xf32>
    %cst_31 = arith.constant 0.000000e+00 : f32
    %59 = vector.broadcast %cst_31 : f32 to vector<2x256xf32>
    %60 = arith.select %53, %59, %58 : vector<2x256xi1>, vector<2x256xf32>
    %c0_32 = arith.constant 0 : index
    %c0_33 = arith.constant 0 : index
    %61 = vector.load %arg10[%c0_32, %c0_33] : memref<2x256xf32, #tpu.memory_space<vmem>>, vector<2x256xf32>
    tpu.vector_store %arg10[%c0_32, %c0_33], %60 {strides = array<i32>} : memref<2x256xf32, #tpu.memory_space<vmem>>, vector<2x256xf32>,
    return
  }
  func.func @transform_0(%arg0: i32) -> (i32, i32, i32) {
    %c0_i32 = arith.constant 0 : i32
    %c0_i32_0 = arith.constant 0 : i32
    %c0_i32_1 = arith.constant 0 : i32
    return %arg0, %c0_i32, %c0_i32_0 : i32, i32, i32
  }
  func.func @transform_1(%arg0: i32) -> (i32, i32) {
    %c0_i32 = arith.constant 0 : i32
    %c0_i32_0 = arith.constant 0 : i32
    return %arg0, %c0_i32 : i32, i32
  }
  func.func @transform_2(%arg0: i32) -> (i32, i32, i32) {
    %c0_i32 = arith.constant 0 : i32
    %c0_i32_0 = arith.constant 0 : i32
    %c0_i32_1 = arith.constant 0 : i32
    return %arg0, %c0_i32, %c0_i32_0 : i32, i32, i32
  }
  func.func @transform_3(%arg0: i32) -> (i32, i32, i32) {
    %c0_i32 = arith.constant 0 : i32
    %c0_i32_0 = arith.constant 0 : i32
    %c0_i32_1 = arith.constant 0 : i32
    return %arg0, %c0_i32, %c0_i32_0 : i32, i32, i32
  }
  func.func @transform_4(%arg0: i32) -> (i32, i32) {
    %c0_i32 = arith.constant 0 : i32
    %c0_i32_0 = arith.constant 0 : i32
    %c0_i32_1 = arith.constant 0 : i32
    return %c0_i32, %c0_i32_0 : i32, i32
  }
  func.func @transform_5(%arg0: i32) -> (i32, i32) {
    %c0_i32 = arith.constant 0 : i32
    %c0_i32_0 = arith.constant 0 : i32
    %c0_i32_1 = arith.constant 0 : i32
    return %c0_i32, %c0_i32_0 : i32, i32
  }
  func.func @transform_6(%arg0: i32) -> (i32, i32) {
    %c0_i32 = arith.constant 0 : i32
    %c0_i32_0 = arith.constant 0 : i32
    %c0_i32_1 = arith.constant 0 : i32
    return %c0_i32, %c0_i32_0 : i32, i32
  }
  func.func @transform_7(%arg0: i32) -> (i32, i32) {
    %c0_i32 = arith.constant 0 : i32
    %c0_i32_0 = arith.constant 0 : i32
    %c0_i32_1 = arith.constant 0 : i32
    return %c0_i32, %c0_i32_0 : i32, i32
  }
  func.func @transform_8(%arg0: i32) -> (i32, i32) {
    %c0_i32 = arith.constant 0 : i32
    %c0_i32_0 = arith.constant 0 : i32
    %c0_i32_1 = arith.constant 0 : i32
    return %c0_i32, %c0_i32_0 : i32, i32
  }
  func.func @transform_9(%arg0: i32) -> (i32, i32) {
    %c0_i32 = arith.constant 0 : i32
    %c0_i32_0 = arith.constant 0 : i32
    return %arg0, %c0_i32 : i32, i32
  }
}

</mosaic_0001>

<llo_original>
// kernel: tpu_custom_call.1
$region0: #{tpu_custom_call.1}
  #allocation0 [shape = 'u32[]', space=smem, size = 0x4, offset = 0x4, fixed_abs, tag = 'smem constant byte address 0x4 - core index']
  #allocation1 [shape = 'u32[144,128]{1,0:T(1,128)}', space=vmem, size = 0x12000, scoped, tag = 'internal scratch']
  #allocation2 [shape = 'f32[1,1]{1,0:T(1,128)S(6)}', space=smem, size = 0x200, scoped, tag = 'scoped memory for tpu_custom_call.1']
  %s0 = inlined_call_operand.hbm [shape: f32[2,8,32], index: 0, kind: input, shape index: {}]
  %s1 = inlined_call_operand.vmem [shape: f32[2,32], index: 1, kind: input, shape index: {}]
  %s2 = inlined_call_operand.vmem [shape: s32[2,8,1], index: 2, kind: input, shape index: {}]
  %s3 = inlined_call_operand.vmem [shape: s32[2,8,1], index: 3, kind: input, shape index: {}]
  %s4 = inlined_call_operand.vmem [shape: f32[32,32], index: 4, kind: input, shape index: {}]
  %s5 = inlined_call_operand.hbm [shape: f32[32,32], index: 5, kind: input, shape index: {}]
  %s6 = inlined_call_operand.vmem [shape: f32[1,32], index: 6, kind: input, shape index: {}]
  %s7 = inlined_call_operand.<no memory space> [shape: f32[1,1], index: 7, kind: input, shape index: {}]
  %s8 = inlined_call_operand.hbm [shape: f32[64,256], index: 8, kind: input, shape index: {}]
  %s9 = inlined_call_operand.hbm [shape: f32[2,256], index: 9, kind: output, shape index: {}]
  %s10 = sld [smem:[#allocation0]]
  $region58: #{tpu_custom_call.1} parent=0
    _
  %s12 = ssub.s32 1, %s10
  %s13 = scalar_select 0, %s12, %s10
  %14 = sst [smem:[#allocation2]] %s7
  $region1: #{tpu_custom_call.1} parent=0
    #allocation3 [shape = 'u8[8192]{0}', space=vmem, size = 0x2000, scoped, tag = 'input window, operand 0, single buffered']
    #allocation4 [shape = 's32[1]{0}', space=sflag, size = 0x4, scoped, tag = 'scoped memory for tpu_custom_call.1']
    #allocation5 [shape = 's32[1]{0}', space=sflag, size = 0x4, scoped, tag = 'scoped memory for tpu_custom_call.1']
    #allocation6 [shape = 'u8[16384]{0}', space=vmem, size = 0x4000, scoped, tag = 'input window, operand 5, single buffered']
    #allocation7 [shape = 's32[1]{0}', space=sflag, size = 0x4, scoped, tag = 'scoped memory for tpu_custom_call.1']
    #allocation8 [shape = 'u8[65536]{0}', space=vmem, size = 0x10000, scoped, tag = 'input window, operand 8, single buffered']
    #allocation9 [shape = 'u8[2048]{0}', space=vmem, size = 0x800, scoped, tag = 'output window, operand 0, single buffered']
    %15 = vsyncpa [#allocation4], 0
    %16 = vsyncpa [#allocation7], 0
    %17 = vsyncpa [#allocation5], 0
    // Predicated region
    $region2: #{tpu_custom_call.1} parent=1 // pred_check
      _
    $region3: #{tpu_custom_call.1} parent=1 // pred_check_branch
      %19 = sbr.rel (0) target = $region5
    $region4: #{tpu_custom_call.1} parent=1 // pred_region
      %s21 = ssub.s32 256, 256
      %22 = vsyncadd [#allocation4], %s21
      %s23 = sshll.u32 [#allocation3], 4
      %s24 = int_to_ptr.vmem [resolvable:$true] %s23
      %29 = dma.hbm_to_vmem [thread:$0]  %s0, 256, %s24, [#allocation4], 128, 128, 8
    $region5: #{tpu_custom_call.1} parent=1 // pred_fallthru
      _
    // Predicated region
    $region6: #{tpu_custom_call.1} parent=1 // pred_check
      _
    $region7: #{tpu_custom_call.1} parent=1 // pred_check_branch
      %31 = sbr.rel (0) target = $region9
    $region8: #{tpu_custom_call.1} parent=1 // pred_region
      _
    $region9: #{tpu_custom_call.1} parent=1 // pred_fallthru
      _
    // Predicated region
    $region10: #{tpu_custom_call.1} parent=1 // pred_check
      _
    $region11: #{tpu_custom_call.1} parent=1 // pred_check_branch
      %33 = sbr.rel (0) target = $region13
    $region12: #{tpu_custom_call.1} parent=1 // pred_region
      _
    $region13: #{tpu_custom_call.1} parent=1 // pred_fallthru
      _
    // Predicated region
    $region14: #{tpu_custom_call.1} parent=1 // pred_check
      _
    $region15: #{tpu_custom_call.1} parent=1 // pred_check_branch
      %35 = sbr.rel (0) target = $region17
    $region16: #{tpu_custom_call.1} parent=1 // pred_region
      _
    $region17: #{tpu_custom_call.1} parent=1 // pred_fallthru
      _
    // Predicated region
    $region18: #{tpu_custom_call.1} parent=1 // pred_check
      _
    $region19: #{tpu_custom_call.1} parent=1 // pred_check_branch
      %37 = sbr.rel (0) target = $region21
    $region20: #{tpu_custom_call.1} parent=1 // pred_region
      _
    $region21: #{tpu_custom_call.1} parent=1 // pred_fallthru
      _
    // Predicated region
    $region22: #{tpu_custom_call.1} parent=1 // pred_check
      _
    $region23: #{tpu_custom_call.1} parent=1 // pred_check_branch
      %39 = sbr.rel (0) target = $region25
    $region24: #{tpu_custom_call.1} parent=1 // pred_region
      %s41 = ssub.s32 512, 512
      %42 = vsyncadd [#allocation7], %s41
      %s43 = sshll.u32 [#allocation6], 4
      %s44 = int_to_ptr.vmem [resolvable:$true] %s43
      %49 = dma.hbm_to_vmem [thread:$0]  %s5, 512, %s44, [#allocation7], 128, 128, 8
    $region25: #{tpu_custom_call.1} parent=1 // pred_fallthru
      _
    // Predicated region
    $region26: #{tpu_custom_call.1} parent=1 // pred_check
      _
    $region27: #{tpu_custom_call.1} parent=1 // pred_check_branch
      %51 = sbr.rel (0) target = $region29
    $region28: #{tpu_custom_call.1} parent=1 // pred_region
      _
    $region29: #{tpu_custom_call.1} parent=1 // pred_fallthru
      _
    // Predicated region
    $region30: #{tpu_custom_call.1} parent=1 // pred_check
      _
    $region31: #{tpu_custom_call.1} parent=1 // pred_check_branch
      %53 = sbr.rel (0) target = $region33
    $region32: #{tpu_custom_call.1} parent=1 // pred_region
      _
    $region33: #{tpu_custom_call.1} parent=1 // pred_fallthru
      _
    // Predicated region
    $region34: #{tpu_custom_call.1} parent=1 // pred_check
      _
    $region35: #{tpu_custom_call.1} parent=1 // pred_check_branch
      %55 = sbr.rel (0) target = $region37
    $region36: #{tpu_custom_call.1} parent=1 // pred_region
      %s57 = ssub.s32 2048, 2048
      %58 = vsyncadd [#allocation7], %s57
      %s59 = sshll.u32 [#allocation8], 4
      %s60 = int_to_ptr.vmem [resolvable:$true] %s59
      %65 = dma.hbm_to_vmem [thread:$0]  %s8, 2048, %s60, [#allocation7], 256, 256, 16
    $region37: #{tpu_custom_call.1} parent=1 // pred_fallthru
      _
    // Predicated region
    $region38: #{tpu_custom_call.1} parent=1 // pred_check
      _
    $region39: #{tpu_custom_call.1} parent=1 // pred_check_branch
      %67 = sbr.rel (0) target = $region41
    $region40: #{tpu_custom_call.1} parent=1 // pred_region
      %68 = dma.done [#allocation4], 256
    $region41: #{tpu_custom_call.1} parent=1 // pred_fallthru
      _
    // Predicated region
    $region42: #{tpu_custom_call.1} parent=1 // pred_check
      _
    $region43: #{tpu_custom_call.1} parent=1 // pred_check_branch
      %70 = sbr.rel (0) target = $region45
    $region44: #{tpu_custom_call.1} parent=1 // pred_region
      %71 = dma.done [#allocation7], 512
    $region45: #{tpu_custom_call.1} parent=1 // pred_fallthru
      _
    // Predicated region
    $region46: #{tpu_custom_call.1} parent=1 // pred_check
      _
    $region47: #{tpu_custom_call.1} parent=1 // pred_check_branch
      %73 = sbr.rel (0) target = $region49
    $region48: #{tpu_custom_call.1} parent=1 // pred_region
      %74 = dma.done [#allocation7], 2048
    $region49: #{tpu_custom_call.1} parent=1 // pred_fallthru
      _
    %v75 = vld [vmem:[#allocation3] sm:$0xff]
    %v76 = vld [vmem:[#allocation3 + $0x8] sm:$0xff]
    %v77 = vld [vmem:[%s1] sm:$0x3]
    %v78 = vld [vmem:[%s4] sm:$0xff]
    %v79 = vld [vmem:[%s4 + $0x8] sm:$0xff]
    %v80 = vld [vmem:[%s4 + $0x10] sm:$0xff]
    %v81 = vld [vmem:[%s4 + $0x18] sm:$0xff]
    %vm82 = vcmask 261120
    %v84 = vsel %vm82, %v75, 0
    %v87 = vsel %vm82, %v76, 0
    %89 = vmatprep.subr.mxu0 0.0
    %90 = vmatpush1.msra.mxu0 0.0
    %91 = vmatprep.subr.mxu0 0.0
    %92 = vmatpush1.msra.mxu0 0.0
    %93 = vmatprep.subr.mxu0 0.0
    %94 = vmatpush1.msra.mxu0 0.0
    %95 = vmatprep.subr.mxu0 0.0
    %96 = vmatpush1.msra.mxu0 0.0
    %97 = vmatprep.subr.mxu0 0.0
    %98 = vmatpush1.msra.mxu0 0.0
    %99 = vmatprep.subr.mxu0 0.0
    %100 = vmatpush1.msra.mxu0 0.0
    %101 = vmatprep.subr.mxu0 0.0
    %102 = vmatpush1.msra.mxu0 0.0
    %103 = vmatprep.subr.mxu0 0.0
    %104 = vmatpush1.msra.mxu0 0.0
    %105 = vmatprep.subr.mxu0 0.0
    %106 = vmatpush1.msra.mxu0 0.0
    %107 = vmatprep.subr.mxu0 0.0
    %108 = vmatpush1.msra.mxu0 0.0
    %109 = vmatprep.subr.mxu0 0.0
    %110 = vmatpush1.msra.mxu0 0.0
    %111 = vmatprep.subr.mxu0 0.0
    %112 = vmatpush1.msra.mxu0 0.0
    %113 = vmatprep.subr.mxu0 0.0
    %114 = vmatpush1.msra.mxu0 %v81
    %115 = vmatprep.subr.mxu0 0.0
    %116 = vmatpush1.msra.mxu0 %v80
    %117 = vmatprep.subr.mxu0 0.0
    %118 = vmatpush1.msra.mxu0 %v79
    %119 = vmatprep.subr.mxu0 0.0
    %120 = vmatpush1.msra.mxu0 %v78
    %121 = vmatprep.subr.mxu0 0.0
    %122 = vmatpush2.msra.mxu0 0.0
    %123 = vmatprep.subr.mxu0 0.0
    %124 = vmatpush2.msra.mxu0 0.0
    %125 = vmatprep.subr.mxu0 0.0
    %126 = vmatpush2.msra.mxu0 0.0
    %127 = vmatprep.subr.mxu0 0.0
    %128 = vmatpush2.msra.mxu0 0.0
    %129 = vmatprep.subr.mxu0 0.0
    %130 = vmatpush2.msra.mxu0 0.0
    %131 = vmatprep.subr.mxu0 0.0
    %132 = vmatpush2.msra.mxu0 0.0
    %133 = vmatprep.subr.mxu0 0.0
    %134 = vmatpush2.msra.mxu0 0.0
    %135 = vmatprep.subr.mxu0 0.0
    %136 = vmatpush2.msra.mxu0 0.0
    %137 = vmatprep.subr.mxu0 0.0
    %138 = vmatpush2.msra.mxu0 0.0
    %139 = vmatprep.subr.mxu0 0.0
    %140 = vmatpush2.msra.mxu0 0.0
    %141 = vmatprep.subr.mxu0 0.0
    %142 = vmatpush2.msra.mxu0 0.0
    %143 = vmatprep.subr.mxu0 0.0
    %144 = vmatpush2.msra.mxu0 0.0
    %145 = vmatprep.subr.mxu0 0.0
    %146 = vmatpush2.msra.mxu0 0.0
    %147 = vmatprep.subr.mxu0 0.0
    %148 = vmatpush2.msra.mxu0 0.0
    %149 = vmatprep.subr.mxu0 0.0
    %150 = vmatpush2.msra.mxu0 0.0
    %151 = vmatprep.subr.mxu0 0.0
    %152 = vmatpush2.msra.mxu0 0.0
    %153 = vmatprep.mubr.f32.mxu0 0.0
    %154 = vmatmul.mubr.f32.gmra.mxu0 %v84
    %v155 = vpop.f32.mrf.mxu0
    %v156 = vadd.f32 0.0, %v155
    %v157 = vpop.f32.mrf.mxu0
    %158 = vmatprep.mubr.f32.mxu0 0.0
    %159 = vmatmul.mubr.f32.gmra.mxu0 %v87
    %v160 = vpop.f32.mrf.mxu0
    %v161 = vadd.f32 0.0, %v160
    %v162 = vpop.f32.mrf.mxu0
    %163 = vdwg.mxu0
    %v164 = vld [vmem:[#allocation6] sm:$0xff]
    %v165 = vld [vmem:[#allocation6 + $0x8] sm:$0xff]
    %v166 = vld [vmem:[#allocation6 + $0x10] sm:$0xff]
    %v167 = vld [vmem:[#allocation6 + $0x18] sm:$0xff]
    %v169 = vsel %vm82, %v77, 0
    %171 = vmatprep.subr.mxu0 0.0
    %172 = vmatpush1.msra.mxu0 0.0
    %173 = vmatprep.subr.mxu0 0.0
    %174 = vmatpush1.msra.mxu0 0.0
    %175 = vmatprep.subr.mxu0 0.0
    %176 = vmatpush1.msra.mxu0 0.0
    %177 = vmatprep.subr.mxu0 0.0
    %178 = vmatpush1.msra.mxu0 0.0
    %179 = vmatprep.subr.mxu0 0.0
    %180 = vmatpush1.msra.mxu0 0.0
    %181 = vmatprep.subr.mxu0 0.0
    %182 = vmatpush1.msra.mxu0 0.0
    %183 = vmatprep.subr.mxu0 0.0
    %184 = vmatpush1.msra.mxu0 0.0
    %185 = vmatprep.subr.mxu0 0.0
    %186 = vmatpush1.msra.mxu0 0.0
    %187 = vmatprep.subr.mxu0 0.0
    %188 = vmatpush1.msra.mxu0 0.0
    %189 = vmatprep.subr.mxu0 0.0
    %190 = vmatpush1.msra.mxu0 0.0
    %191 = vmatprep.subr.mxu0 0.0
    %192 = vmatpush1.msra.mxu0 0.0
    %193 = vmatprep.subr.mxu0 0.0
    %194 = vmatpush1.msra.mxu0 0.0
    %195 = vmatprep.subr.mxu0 0.0
    %196 = vmatpush1.msra.mxu0 %v167
    %197 = vmatprep.subr.mxu0 0.0
    %198 = vmatpush1.msra.mxu0 %v166
    %199 = vmatprep.subr.mxu0 0.0
    %200 = vmatpush1.msra.mxu0 %v165
    %201 = vmatprep.subr.mxu0 0.0
    %202 = vmatpush1.msra.mxu0 %v164
    %203 = vmatprep.subr.mxu0 0.0
    %204 = vmatpush2.msra.mxu0 0.0
    %205 = vmatprep.subr.mxu0 0.0
    %206 = vmatpush2.msra.mxu0 0.0
    %207 = vmatprep.subr.mxu0 0.0
    %208 = vmatpush2.msra.mxu0 0.0
    %209 = vmatprep.subr.mxu0 0.0
    %210 = vmatpush2.msra.mxu0 0.0
    %211 = vmatprep.subr.mxu0 0.0
    %212 = vmatpush2.msra.mxu0 0.0
    %213 = vmatprep.subr.mxu0 0.0
    %214 = vmatpush2.msra.mxu0 0.0
    %215 = vmatprep.subr.mxu0 0.0
    %216 = vmatpush2.msra.mxu0 0.0
    %217 = vmatprep.subr.mxu0 0.0
    %218 = vmatpush2.msra.mxu0 0.0
    %219 = vmatprep.subr.mxu0 0.0
    %220 = vmatpush2.msra.mxu0 0.0
    %221 = vmatprep.subr.mxu0 0.0
    %222 = vmatpush2.msra.mxu0 0.0
    %223 = vmatprep.subr.mxu0 0.0
    %224 = vmatpush2.msra.mxu0 0.0
    %225 = vmatprep.subr.mxu0 0.0
    %226 = vmatpush2.msra.mxu0 0.0
    %227 = vmatprep.subr.mxu0 0.0
    %228 = vmatpush2.msra.mxu0 0.0
    %229 = vmatprep.subr.mxu0 0.0
    %230 = vmatpush2.msra.mxu0 0.0
    %231 = vmatprep.subr.mxu0 0.0
    %232 = vmatpush2.msra.mxu0 0.0
    %233 = vmatprep.subr.mxu0 0.0
    %234 = vmatpush2.msra.mxu0 0.0
    %235 = vmatprep.mubr.f32.mxu0 0.0
    %236 = vmatmul.mubr.f32.gmra.mxu0 %v169
    %v237 = vpop.f32.mrf.mxu0
    %v238 = vadd.f32 0.0, %v237
    %v239 = vpop.f32.mrf.mxu0
    %240 = vdwg.mxu0
    %v243 = vunpack.c.l.s4 1966171168
    %v244 = vunpack.c.0.s8 %v243
    %v245 = vlaneseq
    %v246 = vshrl.u32 %v245, 7
    %v247 = vsub.s32 %v244, %v246
    %v248 = vrot.slane %v238, %v247
    %v249 = vcombine.high %v248, %v248
    %v251 = vunpack.c.l.s4 1966171168
    %v252 = vunpack.c.0.s8 %v251
    %v253 = vlaneseq
    %v254 = vshrl.u32 %v253, 7
    %v255 = vsub.s32 %v252, %v254
    %v256 = vrot.slane %v248, %v255
    %v258 = vunpack.c.l.s4 1966171168
    %v259 = vunpack.c.0.s8 %v258
    %v260 = vlaneseq
    %v261 = vshrl.u32 %v260, 7
    %v262 = vsub.s32 %v259, %v261
    %v263 = vrot.slane %v249, %v262
    %v264 = vlaneseq
    %v265 = vshrl.u32 %v264, 7
    %v266 = vsub.s32 0, %v265
    %v267 = vrot.slane %v256, %v266
    %v268 = vlaneseq
    %v269 = vshrl.u32 %v268, 7
    %v270 = vsub.s32 0, %v269
    %v271 = vrot.slane %v263, %v270
    %v274 = vadd.f32 %v156, %v267
    %v275 = vadd.f32 %v161, %v271
    %v276 = vtanh.pop %v274
    %v277 = vtanh.pop %v275
    %v278 = vld [vmem:[%s6] sm:$0x1]
    %v280 = vlaneseq
    %v281 = vshrl.u32 %v280, 7
    %v282 = vsub.s32 0, %v281
    %v283 = vrot.slane %v278, %v282
    %v285 = vmul.f32 %v276, %v283
    %v286 = vmul.f32 %v277, %v283
    %v287 = vsel %vm82, %v285, 0.0
    %288 = vadd.xlane.f32.xlu0 %v287
    %v289 = vpop.xlane.xlu0 %288
    %v290 = vsel %vm82, %v286, 0.0
    %291 = vadd.xlane.f32.xlu0 %v290
    %v292 = vpop.xlane.xlu0 %291
    %s293 = sld [smem:[#allocation2]]
    %v294 = vstv %s293
    %v295 = vadd.f32 %v289, %v294
    %v296 = vadd.f32 %v292, %v294
    %v297 = vld [vmem:[%s3] sm:$0xff]
    %v298 = vld [vmem:[%s3 + $0x8] sm:$0xff]
    %vm299 = vcmp.gt.s32.totalorder %v297, 0
    %vm300 = vcmp.gt.s32.totalorder %v298, 0
    %v301 = vsel %vm299, -1e+09, %v295
    %v302 = vsel %vm300, -1e+09, %v296
    %vm303 = vcmask 7168
    %v304 = vsel %vm303, %v301, -inf
    %v305 = vrot.slane %v304, 4
    %v306 = vmax.f32 %v304, %v305
    %v307 = vrot.slane %v306, 2
    %v308 = vmax.f32 %v306, %v307
    %v309 = vrot.slane %v308, 1
    %v310 = vmax.f32 %v308, %v309
    %v311 = vsel %vm303, %v302, -inf
    %v312 = vrot.slane %v311, 4
    %v313 = vmax.f32 %v311, %v312
    %v314 = vrot.slane %v313, 2
    %v315 = vmax.f32 %v313, %v314
    %v316 = vrot.slane %v315, 1
    %v317 = vmax.f32 %v315, %v316
    %v318 = vsub.f32 %v301, %v310
    %v319 = vsub.f32 %v302, %v317
    %v320 = vmul.f32 %v318, 1.442695
    %v321 = vpow.pop %v320
    %v322 = vmul.f32 %v319, 1.442695
    %v323 = vpow.pop %v322
    %v324 = vsel %vm303, %v321, 0.0
    %v325 = vrot.slane %v324, 4
    %v326 = vadd.f32 %v324, %v325
    %v327 = vrot.slane %v326, 2
    %v328 = vadd.f32 %v326, %v327
    %v329 = vrot.slane %v328, 1
    %v330 = vadd.f32 %v328, %v329
    %v331 = vsel %vm303, %v323, 0.0
    %v332 = vrot.slane %v331, 4
    %v333 = vadd.f32 %v331, %v332
    %v334 = vrot.slane %v333, 2
    %v335 = vadd.f32 %v333, %v334
    %v336 = vrot.slane %v335, 1
    %v337 = vadd.f32 %v335, %v336
    %v338 = vrcp.pop %v330
    %v339 = vrcp.pop %v337
    %v340 = vmul.f32 %v321, %v338
    %v341 = vmul.f32 %v323, %v339
    %343 = vset.pattern.permute.xlu0 0
    %344 = vperm.xlu0 %343, %v340
    %v345 = vpop.permute.xlu0 %344
    %348 = vset.pattern.permute.xlu0 0
    %349 = vperm.xlu0 %348, %v341
    %v350 = vpop.permute.xlu0 %349
    %v352 = vmul.f32 %v345, %v75
    %v353 = vmul.f32 %v350, %v76
    %v354 = vsel %vm82, %v352, 0.0
    %v355 = vrot.slane %v354, 4
    %v356 = vadd.f32 %v354, %v355
    %v357 = vrot.slane %v356, 2
    %v358 = vadd.f32 %v356, %v357
    %v359 = vrot.slane %v358, 1
    %v360 = vadd.f32 %v358, %v359
    %v361 = vsel %vm82, %v353, 0.0
    %v362 = vrot.slane %v361, 4
    %v363 = vadd.f32 %v361, %v362
    %v364 = vrot.slane %v363, 2
    %v365 = vadd.f32 %v363, %v364
    %v366 = vrot.slane %v365, 1
    %v367 = vadd.f32 %v365, %v366
    %vm370 = vcmask 1041409
    %v371 = vsel %vm370, %v367, %v360
    %373 = vrot.lane.b32.xlu0 %v77, 32
    %v374 = vpop.permute.xlu0 %373
    %v376 = vsel %vm82, %v371, %v374
    %v377 = vld [vmem:[#allocation8] sm:$0xff]
    %v378 = vld [vmem:[#allocation8 + $0x8] sm:$0xff]
    %v379 = vld [vmem:[#allocation8 + $0x10] sm:$0xff]
    %v380 = vld [vmem:[#allocation8 + $0x18] sm:$0xff]
    %v381 = vld [vmem:[#allocation8 + $0x20] sm:$0xff]
    %v382 = vld [vmem:[#allocation8 + $0x28] sm:$0xff]
    %v383 = vld [vmem:[#allocation8 + $0x30] sm:$0xff]
    %v384 = vld [vmem:[#allocation8 + $0x38] sm:$0xff]
    %v385 = vld [vmem:[#allocation8 + $0x40] sm:$0xff]
    %v386 = vld [vmem:[#allocation8 + $0x48] sm:$0xff]
    %v387 = vld [vmem:[#allocation8 + $0x50] sm:$0xff]
    %v388 = vld [vmem:[#allocation8 + $0x58] sm:$0xff]
    %v389 = vld [vmem:[#allocation8 + $0x60] sm:$0xff]
    %v390 = vld [vmem:[#allocation8 + $0x68] sm:$0xff]
    %v391 = vld [vmem:[#allocation8 + $0x70] sm:$0xff]
    %v392 = vld [vmem:[#allocation8 + $0x78] sm:$0xff]
    %vm393 = vcmask 523264
    %v395 = vsel %vm393, %v376, 0
    %397 = vmatprep.subr.mxu0 0.0
    %398 = vmatpush1.msra.mxu0 0.0
    %399 = vmatprep.subr.mxu0 0.0
    %400 = vmatpush1.msra.mxu0 0.0
    %401 = vmatprep.subr.mxu0 0.0
    %402 = vmatpush1.msra.mxu0 0.0
    %403 = vmatprep.subr.mxu0 0.0
    %404 = vmatpush1.msra.mxu0 0.0
    %405 = vmatprep.subr.mxu0 0.0
    %406 = vmatpush1.msra.mxu0 0.0
    %407 = vmatprep.subr.mxu0 0.0
    %408 = vmatpush1.msra.mxu0 0.0
    %409 = vmatprep.subr.mxu0 0.0
    %410 = vmatpush1.msra.mxu0 0.0
    %411 = vmatprep.subr.mxu0 0.0
    %412 = vmatpush1.msra.mxu0 0.0
    %413 = vmatprep.subr.mxu0 %v392
    %414 = vmatpush1.msra.mxu0 %v391
    %415 = vmatprep.subr.mxu0 %v390
    %416 = vmatpush1.msra.mxu0 %v389
    %417 = vmatprep.subr.mxu0 %v388
    %418 = vmatpush1.msra.mxu0 %v387
    %419 = vmatprep.subr.mxu0 %v386
    %420 = vmatpush1.msra.mxu0 %v385
    %421 = vmatprep.subr.mxu0 %v384
    %422 = vmatpush1.msra.mxu0 %v383
    %423 = vmatprep.subr.mxu0 %v382
    %424 = vmatpush1.msra.mxu0 %v381
    %425 = vmatprep.subr.mxu0 %v380
    %426 = vmatpush1.msra.mxu0 %v379
    %427 = vmatprep.subr.mxu0 %v378
    %428 = vmatpush1.msra.mxu0 %v377
    %429 = vmatprep.subr.mxu0 0.0
    %430 = vmatpush2.msra.mxu0 0.0
    %431 = vmatprep.subr.mxu0 0.0
    %432 = vmatpush2.msra.mxu0 0.0
    %433 = vmatprep.subr.mxu0 0.0
    %434 = vmatpush2.msra.mxu0 0.0
    %435 = vmatprep.subr.mxu0 0.0
    %436 = vmatpush2.msra.mxu0 0.0
    %437 = vmatprep.subr.mxu0 0.0
    %438 = vmatpush2.msra.mxu0 0.0
    %439 = vmatprep.subr.mxu0 0.0
    %440 = vmatpush2.msra.mxu0 0.0
    %441 = vmatprep.subr.mxu0 0.0
    %442 = vmatpush2.msra.mxu0 0.0
    %443 = vmatprep.subr.mxu0 0.0
    %444 = vmatpush2.msra.mxu0 0.0
    %445 = vmatprep.subr.mxu0 0.0
    %446 = vmatpush2.msra.mxu0 0.0
    %447 = vmatprep.subr.mxu0 0.0
    %448 = vmatpush2.msra.mxu0 0.0
    %449 = vmatprep.subr.mxu0 0.0
    %450 = vmatpush2.msra.mxu0 0.0
    %451 = vmatprep.subr.mxu0 0.0
    %452 = vmatpush2.msra.mxu0 0.0
    %453 = vmatprep.subr.mxu0 0.0
    %454 = vmatpush2.msra.mxu0 0.0
    %455 = vmatprep.subr.mxu0 0.0
    %456 = vmatpush2.msra.mxu0 0.0
    %457 = vmatprep.subr.mxu0 0.0
    %458 = vmatpush2.msra.mxu0 0.0
    %459 = vmatprep.subr.mxu0 0.0
    %460 = vmatpush2.msra.mxu0 0.0
    %461 = vmatprep.mubr.f32.mxu0 0.0
    %462 = vmatmul.mubr.f32.gmra.mxu0 %v395
    %v463 = vpop.f32.mrf.mxu0
    %v464 = vadd.f32 0.0, %v463
    %v465 = vpop.f32.mrf.mxu0
    %v466 = vadd.f32 0.0, %v465
    %467 = vdwg.mxu0
    %v468 = vld [vmem:[%s2] sm:$0xff]
    %v469 = vld [vmem:[%s2 + $0x8] sm:$0xff]
    %v470 = vlaneseq
    %v471 = vand.u32 %v470, 127
    %v472 = vadd.s32 %v471, 128
    %473 = vset.pattern.permute.xlu0 0
    %474 = vperm.xlu0 %473, %v468
    %v475 = vpop.permute.xlu0 %474
    %476 = vset.pattern.permute.xlu0 0
    %477 = vperm.xlu0 %476, %v469
    %v478 = vpop.permute.xlu0 %477
    %vm479 = vcmp.eq.s32.totalorder %v475, %v471
    %vm480 = vcmp.eq.s32.totalorder %v475, %v472
    %vm481 = vcmp.eq.s32.totalorder %v478, %v471
    %vm482 = vcmp.eq.s32.totalorder %v478, %v472
    %vm483 = vcmp.gt.s32.totalorder %v468, 0
    %vm484 = vcmp.gt.s32.totalorder %v469, 0
    %v485 = vsel %vm483, 1, 0
    %v486 = vsel %vm484, 1, 0
    %487 = vset.pattern.permute.xlu0 0
    %488 = vperm.xlu0 %487, %v485
    %v489 = vpop.permute.xlu0 %488
    %490 = vset.pattern.permute.xlu0 0
    %491 = vperm.xlu0 %490, %v486
    %v492 = vpop.permute.xlu0 %491
    %vm493 = vcmp.eq.s32.totalorder %v489, 1
    %vm494 = vcmp.eq.s32.totalorder %v492, 1
    %vm495 = vmand %vm479, %vm493
    %vm496 = vmand %vm480, %vm493
    %vm497 = vmand %vm481, %vm494
    %vm498 = vmand %vm482, %vm494
    %v499 = vsel %vm495, 1, 0
    %v500 = vsel %vm496, 1, 0
    %v501 = vsel %vm497, 1, 0
    %v502 = vsel %vm498, 1, 0
    %v503 = vrot.slane %v499, 4
    %vm504 = vcmp.gt.s32.totalorder %v499, %v503
    %v505 = vsel %vm504, %v499, %v503
    %v506 = vrot.slane %v505, 2
    %vm507 = vcmp.gt.s32.totalorder %v505, %v506
    %v508 = vsel %vm507, %v505, %v506
    %v509 = vrot.slane %v508, 1
    %vm510 = vcmp.gt.s32.totalorder %v508, %v509
    %v511 = vsel %vm510, %v508, %v509
    %v512 = vrot.slane %v500, 4
    %vm513 = vcmp.gt.s32.totalorder %v500, %v512
    %v514 = vsel %vm513, %v500, %v512
    %v515 = vrot.slane %v514, 2
    %vm516 = vcmp.gt.s32.totalorder %v514, %v515
    %v517 = vsel %vm516, %v514, %v515
    %v518 = vrot.slane %v517, 1
    %vm519 = vcmp.gt.s32.totalorder %v517, %v518
    %v520 = vsel %vm519, %v517, %v518
    %v521 = vrot.slane %v501, 4
    %vm522 = vcmp.gt.s32.totalorder %v501, %v521
    %v523 = vsel %vm522, %v501, %v521
    %v524 = vrot.slane %v523, 2
    %vm525 = vcmp.gt.s32.totalorder %v523, %v524
    %v526 = vsel %vm525, %v523, %v524
    %v527 = vrot.slane %v526, 1
    %vm528 = vcmp.gt.s32.totalorder %v526, %v527
    %v529 = vsel %vm528, %v526, %v527
    %v530 = vrot.slane %v502, 4
    %vm531 = vcmp.gt.s32.totalorder %v502, %v530
    %v532 = vsel %vm531, %v502, %v530
    %v533 = vrot.slane %v532, 2
    %vm534 = vcmp.gt.s32.totalorder %v532, %v533
    %v535 = vsel %vm534, %v532, %v533
    %v536 = vrot.slane %v535, 1
    %vm537 = vcmp.gt.s32.totalorder %v535, %v536
    %v538 = vsel %vm537, %v535, %v536
    %vm539 = vcmp.gt.s32.totalorder %v511, 0
    %vm540 = vcmp.gt.s32.totalorder %v520, 0
    %vm541 = vcmp.gt.s32.totalorder %v529, 0
    %vm542 = vcmp.gt.s32.totalorder %v538, 0
    %v543 = vxor.u32 %v464, 2147483648
    %v544 = vxor.u32 %v466, 2147483648
    %v545 = vmul.f32 %v543, 1.442695
    %v546 = vpow.pop %v545
    %v547 = vmul.f32 %v544, 1.442695
    %v548 = vpow.pop %v547
    %v549 = vadd.f32 %v546, 1.0
    %v550 = vadd.f32 %v548, 1.0
    %v551 = vrcp.pop %v549
    %v552 = vmul.f32 1.0, %v551
    %v553 = vrcp.pop %v550
    %v554 = vmul.f32 1.0, %v553
    %v557 = vrot.slane %v552, 1
    %v558 = vrot.slane %v554, 1
    %v563 = vsel %vm539, 0.0, %v552
    %v564 = vsel %vm540, 0.0, %v554
    %v565 = vsel %vm541, 0.0, %v557
    %v566 = vsel %vm542, 0.0, %v558
    %v571 = vcombine.low %v563, %v564
    %v573 = vunpack.c.l.s4 1983009808
    %v574 = vunpack.c.0.s8 %v573
    %v575 = vlaneseq
    %v576 = vshrl.u32 %v575, 7
    %v577 = vsub.s32 %v574, %v576
    %v578 = vrot.slane %v571, %v577
    %v579 = vcombine.low %v565, %v566
    %v581 = vunpack.c.l.s4 1983009808
    %v582 = vunpack.c.0.s8 %v581
    %v583 = vlaneseq
    %v584 = vshrl.u32 %v583, 7
    %v585 = vsub.s32 %v582, %v584
    %v586 = vrot.slane %v579, %v585
    %vm587 = vcmask 1044484
    %v588 = vsel %vm587, %v578, %v578
    %vm589 = vcmask 1046534
    %v590 = vsel %vm589, %v578, %v588
    %v591 = vrot.slane %v586, 7
    %v592 = vsel %vm370, %v591, %v590
    %vm593 = vcmask 1043459
    %v594 = vsel %vm593, %v591, %v592
    %vm595 = vcmask 1045509
    %v596 = vsel %vm595, %v591, %v594
    %vm597 = vcmask 1047559
    %v598 = vsel %vm597, %v591, %v596
    %600 = vst [vmem:[#allocation9] sm:$0xf] %v598
    // Predicated region
    $region50: #{tpu_custom_call.1} parent=1 // pred_check
      _
    $region51: #{tpu_custom_call.1} parent=1 // pred_check_branch
      %602 = sbr.rel (0) target = $region53
    $region52: #{tpu_custom_call.1} parent=1 // pred_region
      %s604 = ssub.s32 64, 64
      %605 = vsyncadd [#allocation5], %s604
      %s607 = sshll.u32 [#allocation9], 4
      %s608 = int_to_ptr.vmem [resolvable:$true] %s607
      %610 = dma.vmem_to_hbm [thread:$0]  %s608, 64, %s9, [#allocation5]
    $region53: #{tpu_custom_call.1} parent=1 // pred_fallthru
      _
    // Predicated region
    $region54: #{tpu_custom_call.1} parent=1 // pred_check
      _
    $region55: #{tpu_custom_call.1} parent=1 // pred_check_branch
      %612 = sbr.rel (0) target = $region57
    $region56: #{tpu_custom_call.1} parent=1 // pred_region
      %613 = dma.done [#allocation5], 64
    $region57: #{tpu_custom_call.1} parent=1 // pred_fallthru
      _
    %614 = vsyncpa [#allocation4], 1
    %615 = vsyncpa [#allocation7], 1
    %616 = vsyncpa [#allocation5], 1

</llo_original>
